<compile_context>
chip_gen: v6e
topology: v6e:2x2x1
jax: 0.10.0
libtpu: 0.0.40
codegen_flags: <defaults>
</compile_context>

<pallas_src>
import functools

import jax
import jax.numpy as jnp
from jax.experimental import pallas as pl
from jax.experimental.pallas import tpu as pltpu

_LANES = 128


def _swish_kernel(x_ref, o_ref):
    x = x_ref[...]
    # Compute in f32 for accuracy (safe on all generations), cast back.
    xf = x.astype(jnp.float32)
    o_ref[...] = (xf * jax.nn.sigmoid(xf)).astype(o_ref.dtype)


def _round_up(v: int, m: int) -> int:
    return ((v + m - 1) // m) * m


@functools.lru_cache(maxsize=None)
def _tpu_tuning():
    """Per-generation (block_bytes, min_grid, vmem_limit_bytes)."""
    kind = ""
    try:
        kind = jax.devices()[0].device_kind.lower()
    except Exception:  # pragma: no cover - be robust off-TPU / in interpret
        pass
    if "v7" in kind or "7x" in kind:
        # 2 TCs, 3.2 TB/s HBM, 64 MiB VMEM, 32 MiB scoped default -> raise it.
        # 8 MiB blocks: (in + out) x 2 buffers = 32 MiB < 40 MiB limit.
        return {"block_bytes": 8 << 20, "min_grid": 4, "vmem_limit": 40 << 20}
    if "v6" in kind:
        # 1 TC, 32 MiB scoped default: 4 MiB blocks -> 16 MiB, no limit bump.
        return {"block_bytes": 4 << 20, "min_grid": 3, "vmem_limit": None}
    if "v5" in kind:
        # v5e: 16 MiB scoped default: 2 MiB blocks -> 8 MiB, plenty of headroom.
        return {"block_bytes": 2 << 20, "min_grid": 3, "vmem_limit": None}
    # Unknown / older generation: conservative defaults.
    return {"block_bytes": 2 << 20, "min_grid": 4, "vmem_limit": None}


def _pick_width(n_aligned: int) -> int:
    """Widest lane-dense slab width that divides n (store-efficiency sweep)."""
    for w in (1024, 512):
        if n_aligned % w == 0 and (n_aligned // w) >= 8:
            return w
    return _LANES


def _swish_2d(x2d, *, block_bytes, min_grid, vmem_limit, alias):
    rows, width = x2d.shape
    itemsize = x2d.dtype.itemsize
    # Native sublane granule: 8 for 4-byte, 16 for 2-byte, 32 for 1-byte dtypes.
    granule = max(8, 32 // max(1, itemsize))

    target_rows = max(granule, block_bytes // (width * itemsize))
    if rows <= granule:
        tr = rows  # single block spanning the full (small) row extent
    else:
        tr = max(
            granule,
            min(target_rows, _round_up(pl.cdiv(rows, min_grid), granule)),
        )
    grid_rows = pl.cdiv(rows, tr)

    return pl.pallas_call(
        _swish_kernel,
        out_shape=jax.ShapeDtypeStruct(x2d.shape, x2d.dtype),
        grid_spec=pltpu.PrefetchScalarGridSpec(
            num_scalar_prefetch=0,
            grid=(grid_rows,),
            in_specs=[pl.BlockSpec((tr, width), lambda i: (i, 0))],
            out_specs=pl.BlockSpec((tr, width), lambda i: (i, 0)),
        ),
        compiler_params=pltpu.CompilerParams(
            dimension_semantics=("parallel",),
            vmem_limit_bytes=vmem_limit,
        ),
        # Alias only when the operand is a fresh intermediate; aliasing a jit
        # entry parameter would force XLA to insert a hidden HBM copy.
        input_output_aliases={0: 0} if alias else {},
    )(x2d)


def _swish_jnp(x_flat, dtype):
    xf = x_flat.astype(jnp.float32)
    return (xf * jax.nn.sigmoid(xf)).astype(dtype)


@jax.jit
def swish(x: jax.Array) -> jax.Array:
    """Elementwise Swish via Pallas. Handles any shape/dtype."""
    orig_shape = x.shape
    dtype = x.dtype
    n = x.size
    if n == 0:
        return x

    tune = _tpu_tuning()
    flat = x.reshape(-1)
    n_main = (n // _LANES) * _LANES  # 128-aligned prefix length

    if n_main == n:
        # Aligned fast path (the common case for NCHW activations):
        # a free reshape, no pad, no slice, no extra HBM traffic.
        width = _pick_width(n)
        out2d = _swish_2d(flat.reshape(n // width, width), alias=False, **tune)
        return out2d.reshape(orig_shape)

    if n_main == 0:
        # Entire tensor is smaller than one lane row: plain jnp is optimal.
        return _swish_jnp(flat, dtype).reshape(orig_shape)

    # Ragged path: run the kernel on the aligned prefix and compute the
    # <128-element tail with plain jnp (no full-array pad + post-slice).
    main = flat[:n_main]
    width = _pick_width(n_main)
    main_out = _swish_2d(
        main.reshape(n_main // width, width), alias=True, **tune
    ).reshape(-1)
    tail_out = _swish_jnp(flat[n_main:], dtype)
    return jnp.concatenate([main_out, tail_out]).reshape(orig_shape)


# TODO(synk): backward pass (swish_jit_bwd / custom VJP) is not implemented;
# forward only, matching Swish.forward semantics.


if __name__ == "__main__":
    key = jax.random.PRNGKey(0)

    # NCHW activation, n % 128 == 0 -> aligned fast path.
    x = jax.random.normal(key, (2, 4, 16, 16), dtype=jnp.float32)
    y = swish(x)
    jax.block_until_ready(y)
    y_ref = x * jax.nn.sigmoid(x)
    assert y.shape == x.shape and y.dtype == x.dtype
    assert jnp.allclose(y, y_ref, atol=1e-6, rtol=1e-6)

    # Tiny ragged shape (n < 128) -> pure jnp tail path.
    x2 = jax.random.normal(jax.random.PRNGKey(1), (3, 5, 7), dtype=jnp.float32)
    y2 = swish(x2)
    jax.block_until_ready(y2)
    y2_ref = x2 * jax.nn.sigmoid(x2)
    assert y2.shape == x2.shape and y2.dtype == x2.dtype
    assert jnp.allclose(y2, y2_ref, atol=1e-6, rtol=1e-6)

    # Ragged shape with an aligned prefix -> kernel prefix + jnp tail.
    x3 = jax.random.normal(jax.random.PRNGKey(2), (5, 50), dtype=jnp.float32)
    y3 = swish(x3)
    jax.block_until_ready(y3)
    y3_ref = x3 * jax.nn.sigmoid(x3)
    assert y3.shape == x3.shape and y3.dtype == x3.dtype
    assert jnp.allclose(y3, y3_ref, atol=1e-6, rtol=1e-6)

    # bf16 input -> exercises the 16-row sublane granule.
    x4 = jax.random.normal(jax.random.PRNGKey(3), (4, 16, 32), dtype=jnp.bfloat16)
    y4 = swish(x4)
    jax.block_until_ready(y4)
    x4f = x4.astype(jnp.float32)
    y4_ref = (x4f * jax.nn.sigmoid(x4f)).astype(jnp.bfloat16)
    assert y4.shape == x4.shape and y4.dtype == x4.dtype
    assert jnp.allclose(
        y4.astype(jnp.float32), y4_ref.astype(jnp.float32), atol=1e-2, rtol=1e-2
    )

    print("KERNEL_OK")
</pallas_src>

<mosaic_0001>
module attributes {stable_mosaic.version = 11 : i64} {
  func.func @_swish_kernel(%arg0: i32, %arg1: memref<8x128xf32, #tpu.memory_space<vmem>>, %arg2: memref<8x128xf32, #tpu.memory_space<vmem>>) attributes {dimension_semantics = [#tpu.dimension_semantics<parallel>], iteration_bounds = array<i64: 2>, scalar_prefetch = 0 : i64, scratch_operands = 0 : i64, tpu.core_type = #tpu.core_type<tc>, window_params = [{transform_indices = @transform_0, window_bounds = array<i64: 8, 128>}, {transform_indices = @transform_1, window_bounds = array<i64: 8, 128>}]} {
    %c0 = arith.constant 0 : index
    %c0_0 = arith.constant 0 : index
    %0 = vector.load %arg1[%c0, %c0_0] : memref<8x128xf32, #tpu.memory_space<vmem>>, vector<8x128xf32>
    %1 = arith.negf %0 : vector<8x128xf32>
    %2 = math.exp %1 : vector<8x128xf32>
    %cst = arith.constant 1.000000e+00 : f32
    %3 = vector.broadcast %cst : f32 to vector<8x128xf32>
    %4 = arith.addf %3, %2 : vector<8x128xf32>
    %5 = arith.divf %3, %4 : vector<8x128xf32>
    %6 = arith.mulf %0, %5 : vector<8x128xf32>
    %c0_1 = arith.constant 0 : index
    %c0_2 = arith.constant 0 : index
    %7 = vector.load %arg2[%c0_1, %c0_2] : memref<8x128xf32, #tpu.memory_space<vmem>>, vector<8x128xf32>
    tpu.vector_store %arg2[%c0_1, %c0_2], %6 {strides = array<i32>} : memref<8x128xf32, #tpu.memory_space<vmem>>, vector<8x128xf32>,
    return
  }
  func.func @transform_0(%arg0: i32) -> (i32, i32) {
    %c0_i32 = arith.constant 0 : i32
    %c0_i32_0 = arith.constant 0 : i32
    return %arg0, %c0_i32 : i32, i32
  }
  func.func @transform_1(%arg0: i32) -> (i32, i32) {
    %c0_i32 = arith.constant 0 : i32
    %c0_i32_0 = arith.constant 0 : i32
    return %arg0, %c0_i32 : i32, i32
  }
}

</mosaic_0001>

<llo_original>
// kernel: swish.1
$region0: #{swish.1}
  #allocation0 [shape = 'u32[]', space=smem, size = 0x4, offset = 0x4, fixed_abs, tag = 'smem constant byte address 0x4 - core index']
  #allocation1 [shape = 'u32[144,128]{1,0:T(1,128)}', space=vmem, size = 0x12000, scoped, tag = 'internal scratch']
  %s0 = inlined_call_operand.vmem [shape: f32[16,128], index: 0, kind: input, shape index: {}]
  %s1 = inlined_call_operand.vmem [shape: f32[16,128], index: 1, kind: output, shape index: {}]
  %s2 = sld [smem:[#allocation0]]
  $region37: #{swish.1} parent=0
    _
  %s4 = ssub.s32 1, %s2
  %s5 = scalar_select 0, %s4, %s2
  loop: start=0, step=1, limit=4
  $region2: #{swish.1} parent=0 // loop_pre_header
    _
  $region3: #{swish.1} parent=0 // loop_header
    %s7 = sphi 0, %s11
    %p8 = scmp.ge.s32.totalorder %s7, 4
    %s17 = sphi 0, %s19
    %s20 = sphi 0, %s17
    %s21 = sphi 0, %s20
    %s37 = sphi 0, %s21
    %s43 = sphi 0, %s45
    %s46 = sphi 0, %s43
    %s47 = sphi 0, %s46
    %s63 = sphi 0, %s47
  $region4: #{swish.1} parent=0 // loop_header_branch
    %10 = sbr.rel (%p8) target = $region8
  $region5: #{swish.1} parent=0 // loop_body
    %s12 = ssub.s32 %s7, 1
    %s13 = ssub.s32 %s7, 2
    %s14 = sadd.s32 %s7, 1
    %s15 = ssub.s32 %s7, %s14
    %p16 = scmp.eq.s32.totalorder %s15, 0
    %s18 = sadd.s32 %s17, 1
    %s19 = scalar_select %p16, %s17, %s18
    %p22 = pneg %p16
    %p23 = scmp.eq.s32.totalorder %s7, 1
    %p24 = por %p22, %p23
    %p25 = scmp.ne.s32.totalorder %s17, %s20
    %p26 = scmp.eq.s32.totalorder %s7, 0
    %p27 = por %p25, %p26
    %p28 = scmp.ne.s32.totalorder %s17, %s20
    %p29 = scmp.eq.s32.totalorder %s12, 1
    %p30 = por %p28, %p29
    %p31 = scmp.ne.s32.totalorder %s20, %s21
    %p32 = scmp.eq.s32.totalorder %s12, 0
    %p33 = por %p31, %p32
    %p34 = scmp.ne.s32.totalorder %s20, %s21
    %p35 = scmp.eq.s32.totalorder %s13, 1
    %p36 = por %p34, %p35
    %p38 = scmp.ne.s32.totalorder %s21, %s37
    %p39 = scmp.eq.s32.totalorder %s13, 0
    %p40 = por %p38, %p39
    %s41 = ssub.s32 %s7, %s14
    %p42 = scmp.eq.s32.totalorder %s41, 0
    %s44 = sadd.s32 %s43, 1
    %s45 = scalar_select %p42, %s43, %s44
    %p48 = pneg %p42
    %p49 = scmp.eq.s32.totalorder %s7, 1
    %p50 = por %p48, %p49
    %p51 = scmp.ne.s32.totalorder %s43, %s46
    %p52 = scmp.eq.s32.totalorder %s7, 0
    %p53 = por %p51, %p52
    %p54 = scmp.ne.s32.totalorder %s43, %s46
    %p55 = scmp.eq.s32.totalorder %s12, 1
    %p56 = por %p54, %p55
    %p57 = scmp.ne.s32.totalorder %s46, %s47
    %p58 = scmp.eq.s32.totalorder %s12, 0
    %p59 = por %p57, %p58
    %p60 = scmp.ne.s32.totalorder %s46, %s47
    %p61 = scmp.eq.s32.totalorder %s13, 1
    %p62 = por %p60, %p61
    %p64 = scmp.ne.s32.totalorder %s47, %s63
    %p65 = scmp.eq.s32.totalorder %s13, 0
    %p66 = por %p64, %p65
    %p67 = scmp.le.s32.totalorder 1, %s7
    %p68 = scmp.lt.s32.totalorder %s7, 3
    %p69 = pnand %p67, %p68
    %p70 = pneg %p69
    // Predicated region
    $region9: #{swish.1} parent=5 // pred_check
      _
    $region10: #{swish.1} parent=5 // pred_check_branch
      %72 = sbr.rel (%p69) target = $region12
    $region11: #{swish.1} parent=5 // pred_region
      %s73 = ssub.s32 %s7, 1
    $region12: #{swish.1} parent=5 // pred_fallthru
      _
    %p74 = scmp.lt.s32.totalorder %s7, 2
    // Predicated region
    $region13: #{swish.1} parent=5 // pred_check
      %p75 = pneg %p74
    $region14: #{swish.1} parent=5 // pred_check_branch
      %77 = sbr.rel (%p75) target = $region16
    $region15: #{swish.1} parent=5 // pred_region
      // Predicated region
      $region17: #{swish.1} parent=15 // pred_check
        %p78 = pneg %p27
      $region18: #{swish.1} parent=15 // pred_check_branch
        %80 = sbr.rel (%p78) target = $region20
      $region19: #{swish.1} parent=15 // pred_region
        %p81 = scmp.lt.s32.totalorder %s7, 1
        %s82 = scalar_select %p81, %s7, 1
        %s83 = smul.addr %s82, 8
        %s84 = scalar_lea.vmem %s0, %s83
      $region20: #{swish.1} parent=15 // pred_fallthru
        _
    $region16: #{swish.1} parent=5 // pred_fallthru
      _
    %p85 = scmp.le.s32.totalorder 1, %s7
    %p86 = scmp.lt.s32.totalorder %s7, 3
    %p87 = pnand %p85, %p86
    %p88 = pneg %p87
    // Predicated region
    $region21: #{swish.1} parent=5 // pred_check
      _
    $region22: #{swish.1} parent=5 // pred_check_branch
      %90 = sbr.rel (%p87) target = $region24
    $region23: #{swish.1} parent=5 // pred_region
      %s91 = ssub.s32 %s7, 1
      %p92 = scmp.lt.s32.totalorder %s12, 1
      %s93 = scalar_select %p92, %s12, 1
      %s94 = smul.addr %s93, 8
      %s95 = scalar_lea.vmem %s0, %s94
      %p96 = pneg %p33
      %p97 = pneg %p30
      %p98 = pneg %p59
      %p99 = pneg %p56
      %p100 = scmp.lt.s32.totalorder %s12, 1
      %s101 = scalar_select %p100, %s12, 1
      %s102 = smul.addr %s101, 8
      %s103 = scalar_lea.vmem %s1, %s102
      %p104 = scmp.lt.s32.totalorder %s12, 1
      %s105 = scalar_select %p104, %s12, 1
      %s106 = smul.addr %s105, 8
      %s107 = scalar_lea.vmem %s0, %s106
      %p108 = scmp.lt.s32.totalorder %s12, 1
      %s109 = scalar_select %p108, %s12, 1
      %s110 = smul.addr %s109, 8
      %s111 = scalar_lea.vmem %s1, %s110
      %v112 = vld [vmem:[%s107] sm:$0xff]
      %v113 = vxor.u32 %v112, 2147483648
      %v114 = vmul.f32 %v113, 1.442695
      %v115 = vpow.pop %v114
      %v116 = vadd.f32 %v115, 1.0
      %v117 = vrcp.pop %v116
      %v118 = vmul.f32 1.0, %v117
      %v119 = vmul.f32 %v112, %v118
      %120 = vst [vmem:[%s111] sm:$0xff] %v119
      %p121 = scmp.lt.s32.totalorder %s12, 1
      %s122 = scalar_select %p121, %s12, 1
      %s123 = smul.addr %s122, 8
      %s124 = scalar_lea.vmem %s1, %s123
      // Predicated region
      $region25: #{swish.1} parent=23 // pred_check
        %p125 = pneg %p56
      $region26: #{swish.1} parent=23 // pred_check_branch
        %127 = sbr.rel (%p125) target = $region28
      $region27: #{swish.1} parent=23 // pred_region
        _
      $region28: #{swish.1} parent=23 // pred_fallthru
        _
    $region24: #{swish.1} parent=5 // pred_fallthru
      _
    %p128 = scmp.le.s32.totalorder 2, %s7
    // Predicated region
    $region29: #{swish.1} parent=5 // pred_check
      %p129 = pneg %p128
    $region30: #{swish.1} parent=5 // pred_check_branch
      %131 = sbr.rel (%p129) target = $region32
    $region31: #{swish.1} parent=5 // pred_region
      %s132 = ssub.s32 %s7, 2
      // Predicated region
      $region33: #{swish.1} parent=31 // pred_check
        %p133 = pneg %p62
      $region34: #{swish.1} parent=31 // pred_check_branch
        %135 = sbr.rel (%p133) target = $region36
      $region35: #{swish.1} parent=31 // pred_region
        %p136 = scmp.lt.s32.totalorder %s13, 1
        %s137 = scalar_select %p136, %s13, 1
        %s138 = smul.addr %s137, 8
        %s139 = scalar_lea.vmem %s1, %s138
      $region36: #{swish.1} parent=31 // pred_fallthru
        _
    $region32: #{swish.1} parent=5 // pred_fallthru
      _
  $region6: #{swish.1} parent=0 // loop_footer
    %s11 = sadd.s32 1, %s7
  $region7: #{swish.1} parent=0 // loop_footer_branch
    %6 = sbr.rel target = $region3
  $region8: #{swish.1} parent=0 // loop_exit
    _

</llo_original>
